<compile_context>
chip_gen: v7x
topology: tpu7x:2x2x1
jax: 0.10.0
libtpu: 0.0.40
codegen_flags: <defaults>
</compile_context>

<pallas_src>
import functools
import math

import jax
import jax.numpy as jnp
from jax.experimental import pallas as pl
from jax.experimental.pallas import tpu as pltpu

ALPHA = 0.2
_HALF_LOG_2PI = 0.5 * math.log(2.0 * math.pi)
_LANES = 128
_SUBLANES = 8
# 3 streaming inputs x 2 pipeline buffers x tile bytes must fit this budget.
_STREAM_VMEM_BUDGET = 12 * 1024 * 1024
_VMEM_LIMIT_BYTES = 32 * 1024 * 1024   # >= default scoped VMEM on v5e/v6e/v7x


def _round_up(x: int, m: int) -> int:
    return ((x + m - 1) // m) * m


def _round_down(x: int, m: int) -> int:
    return (x // m) * m


def _tile_cap(ncols: int, max_tile_rows) -> int:
    cap = _STREAM_VMEM_BUDGET // (3 * 2 * 4 * ncols)       # f32 bytes
    cap = max(_SUBLANES, _round_down(cap, _SUBLANES))
    if max_tile_rows is not None:
        cap = min(cap, max(_SUBLANES, _round_down(int(max_tile_rows), _SUBLANES)))
    return cap


def _log_prob(mean, std, act):
    # Diagonal-Gaussian per-element log-density (== Normal.log_prob).
    inv_std = 1.0 / std
    z = (act - mean) * inv_std
    return -0.5 * z * z + jnp.log(inv_std) - _HALF_LOG_2PI


def _fold_rows(x):
    """Sum a (tile_rows, ncols) f32 tile into one (8, 128) vreg (VALU adds only)."""
    r, c = x.shape
    x = x.reshape(r // _SUBLANES, _SUBLANES, c // _LANES, _LANES)
    return jnp.sum(x, axis=(0, 2))


def _policy_loss_kernel(mean_ref, std_ref, act_ref, q1_ref, q2_ref,
                        out_ref, acc_ref, *,
                        alpha, n_valid, batch, tile_rows, ncols, ragged):
    c = pl.program_id(0)            # core-parallel axis
    i = pl.program_id(1)            # streaming ("arbitrary") axis
    steps = pl.num_programs(1)

    @pl.when(i == 0)
    def _():
        acc_ref[...] = jnp.zeros_like(acc_ref)

    mean = mean_ref[...].astype(jnp.float32)
    std = std_ref[...].astype(jnp.float32)
    act = act_ref[...].astype(jnp.float32)

    if not ragged:
        # Exact tiling: every element of every tile is valid -> no mask at all.
        acc_ref[...] += _fold_rows(_log_prob(mean, std, act))
    else:
        tile_elems = tile_rows * ncols
        g = c * steps + i                                   # un-clamped tile index
        is_full = (g + 1) * tile_elems <= n_valid

        @pl.when(is_full)
        def _():
            acc_ref[...] += _fold_rows(_log_prob(mean, std, act))

        @pl.when(jnp.logical_not(is_full))
        def _():
            row = (g * tile_rows
                   + jax.lax.broadcasted_iota(jnp.int32, (tile_rows, ncols), 0))
            col = jax.lax.broadcasted_iota(jnp.int32, (tile_rows, ncols), 1)
            valid = row * ncols + col < n_valid
            # Ragged / phantom regions may hold unspecified data: sanitize std so
            # no NaN/Inf is ever produced, then select-out invalid elements.
            lp = _log_prob(mean, jnp.where(valid, std, 1.0), act)
            acc_ref[...] += _fold_rows(jnp.where(valid, lp, 0.0))

    @pl.when(i == steps - 1)
    def _():
        lp_sum = jnp.sum(acc_ref[...])                      # single cross-lane reduce
        val = (alpha / n_valid) * lp_sum
        # min-Q term: computed once, subtracted only on core 0's partial.
        q_min = jnp.minimum(q1_ref[...].astype(jnp.float32),
                            q2_ref[...].astype(jnp.float32))
        q_term = jnp.sum(q_min) * (1.0 / batch)
        val = val - jnp.where(c == 0, q_term, 0.0)
        out_ref[...] = jnp.full(out_ref.shape, val, jnp.float32)


def policy_loss(mean, std, actions, q_value1, q_value2,
                alpha: float = ALPHA, max_tile_rows=None):
    """SAC policy loss (scalar float32) computed in a single Pallas kernel."""
    B, A = mean.shape
    assert std.shape == (B, A) and actions.shape == (B, A)
    assert q_value1.shape[0] == B and q_value2.shape[0] == B
    n_valid = B * A

    # ---- choose layout ----------------------------------------------------
    use_direct = (A % _LANES == 0) and (B >= _SUBLANES) and \
        (3 * 2 * 4 * _SUBLANES * A <= _STREAM_VMEM_BUDGET)

    if use_direct:
        # No relayout / no extra HBM traffic: stream (B, A) as-is.
        ncols = A
        mean_s, std_s, act_s = mean, std, actions
        total_rows = B
        tile_rows = min(_tile_cap(ncols, max_tile_rows), _round_down(B, _SUBLANES))
    else:
        # Lane-dense slab (rows, 128); pad rows only to a multiple of 8
        # (ragged last tile is masked in-kernel, not padded away).
        ncols = _LANES
        rows = pl.cdiv(n_valid, _LANES)
        rows_pad = _round_up(rows, _SUBLANES)
        pad = rows_pad * _LANES - n_valid

        def to_slab(x, pad_val):
            flat = x.reshape(-1)
            if pad:
                flat = jnp.pad(flat, (0, pad), constant_values=pad_val)
            return flat.reshape(rows_pad, _LANES)

        mean_s = to_slab(mean, 0.0)
        std_s = to_slab(std, 1.0)          # finite padding; masked in-kernel
        act_s = to_slab(actions, 0.0)
        total_rows = rows_pad
        tile_rows = min(_tile_cap(ncols, max_tile_rows), rows_pad)

    nt = pl.cdiv(total_rows, tile_rows)          # number of real row tiles
    ncore = 2 if nt >= 2 else 1                  # feed both TCs on v7x; harmless elsewhere
    steps = pl.cdiv(nt, ncore)
    tile_elems = tile_rows * ncols
    ragged = (n_valid % tile_elems != 0) or (nt % ncore != 0)
    assert n_valid + 2 * tile_elems < 2**31, "int32 flat-index overflow"

    # ---- tiny lane-dense q slab (B floats each; negligible relayout) ------
    q_rows = pl.cdiv(B, _LANES)
    b_pad = q_rows * _LANES

    def to_q_slab(q):
        flat = q.reshape(-1).astype(jnp.float32)
        if b_pad != B:
            flat = jnp.pad(flat, (0, b_pad - B), constant_values=0.0)
        return flat.reshape(q_rows, _LANES)

    q1_s = to_q_slab(q_value1)
    q2_s = to_q_slab(q_value2)

    last_tile = nt - 1

    def stream_map(c, i):
        # Clamp phantom grid steps (odd tile count split over 2 cores) to the
        # last real tile; their contribution is masked to zero in-kernel.
        return (jnp.minimum(c * steps + i, last_tile), 0)

    kernel = functools.partial(
        _policy_loss_kernel, alpha=float(alpha), n_valid=n_valid, batch=B,
        tile_rows=tile_rows, ncols=ncols, ragged=ragged)

    out = pl.pallas_call(
        kernel,
        out_shape=jax.ShapeDtypeStruct((ncore, _SUBLANES, _LANES), jnp.float32),
        grid_spec=pltpu.PrefetchScalarGridSpec(
            num_scalar_prefetch=0,
            grid=(ncore, steps),
            in_specs=[
                pl.BlockSpec((tile_rows, ncols), stream_map),          # mean
                pl.BlockSpec((tile_rows, ncols), stream_map),          # std
                pl.BlockSpec((tile_rows, ncols), stream_map),          # actions
                pl.BlockSpec((q_rows, _LANES), lambda c, i: (0, 0)),   # q1 (resident)
                pl.BlockSpec((q_rows, _LANES), lambda c, i: (0, 0)),   # q2 (resident)
            ],
            out_specs=pl.BlockSpec((1, _SUBLANES, _LANES), lambda c, i: (c, 0, 0)),
            scratch_shapes=[pltpu.VMEM((_SUBLANES, _LANES), jnp.float32)],
        ),
        compiler_params=pltpu.CompilerParams(
            dimension_semantics=("parallel", "arbitrary"),
            vmem_limit_bytes=_VMEM_LIMIT_BYTES),
        cost_estimate=pl.CostEstimate(
            flops=8 * n_valid + 3 * B,
            transcendentals=n_valid,
            bytes_accessed=3 * 4 * n_valid + 2 * 4 * B
                           + 4 * ncore * _SUBLANES * _LANES),
    )(mean_s, std_s, act_s, q1_s, q2_s)

    # Sum the per-core partial losses (2 scalars at most).
    return jnp.sum(out[:, 0, 0])


class PolicyLoss:
    """Thin functional equivalent of the PyTorch module (diagonal Gaussian)."""

    def __init__(self, alpha: float = ALPHA):
        self.alpha = alpha

    def __call__(self, action_datas, actions, q_value1, q_value2):
        mean, std = action_datas
        return policy_loss(mean, std, actions, q_value1, q_value2, alpha=self.alpha)


def policy_loss_ref(mean, std, actions, q_value1, q_value2, alpha: float = ALPHA):
    """Pure-JAX reference (matches the PyTorch module exactly)."""
    z = (actions - mean) / std
    log_prob = -0.5 * z * z - jnp.log(std) - _HALF_LOG_2PI
    return jnp.mean(alpha * log_prob - jnp.minimum(q_value1, q_value2))


def _make_inputs(key, B, A):
    km, ks, ka, k1, k2 = jax.random.split(key, 5)
    mean = jax.random.normal(km, (B, A), dtype=jnp.float32)
    std = jax.nn.softplus(jax.random.normal(ks, (B, A), dtype=jnp.float32)) + 1e-2
    act = jax.random.normal(ka, (B, A), dtype=jnp.float32)
    q1 = jax.random.normal(k1, (B, 1), dtype=jnp.float32)
    q2 = jax.random.normal(k2, (B, 1), dtype=jnp.float32)
    return mean, std, act, q1, q2


if __name__ == "__main__":
    keys = jax.random.split(jax.random.PRNGKey(0), 5)

    # (B, A, forced max_tile_rows) -- exercises slab / direct / ragged / dual-core paths.
    cases = [
        (8, 16, None),       # module-sized demo: slab path, single tile
        (1000, 24, None),    # slab path, in-tile padding mask
        (1000, 24, 64),      # slab path, multi-tile + dual-core split + phantom tile
        (256, 128, None),    # direct path (A % 128 == 0), exact tiling, no mask
        (100, 256, None),    # direct path, ragged rows + dual-core split
    ]
    for k, (B, A, mtr) in zip(keys, cases):
        args = _make_inputs(k, B, A)
        got = jax.block_until_ready(policy_loss(*args, max_tile_rows=mtr))
        want = policy_loss_ref(*args)
        assert jnp.allclose(got, want, atol=1e-4, rtol=1e-4), (B, A, mtr, got, want)

    print("KERNEL_OK")
</pallas_src>

<mosaic_0001>
module attributes {stable_mosaic.version = 11 : i64} {
  func.func @_policy_loss_kernel(%arg0: i32, %arg1: i32, %arg2: memref<8x128xf32, #tpu.memory_space<vmem>>, %arg3: memref<8x128xf32, #tpu.memory_space<vmem>>, %arg4: memref<8x128xf32, #tpu.memory_space<vmem>>, %arg5: memref<1x128xf32, #tpu.memory_space<vmem>>, %arg6: memref<1x128xf32, #tpu.memory_space<vmem>>, %arg7: memref<1x8x128xf32, #tpu.memory_space<vmem>>, %arg8: memref<8x128xf32, #tpu.memory_space<vmem>>) attributes {dimension_semantics = [#tpu.dimension_semantics<parallel>, #tpu.dimension_semantics<arbitrary>], iteration_bounds = array<i64: 1, 1>, scalar_prefetch = 0 : i64, scratch_operands = 1 : i64, tpu.core_type = #tpu.core_type<tc>, window_params = [{transform_indices = @transform_0, window_bounds = array<i64: 8, 128>}, {transform_indices = @transform_1, window_bounds = array<i64: 8, 128>}, {transform_indices = @transform_2, window_bounds = array<i64: 8, 128>}, {pipeline_mode = #tpu.pipeline_mode<synchronous>, transform_indices = @transform_3, window_bounds = array<i64: 1, 128>}, {pipeline_mode = #tpu.pipeline_mode<synchronous>, transform_indices = @transform_4, window_bounds = array<i64: 1, 128>}, {transform_indices = @transform_5, window_bounds = array<i64: 1, 8, 128>}]} {
    %c0_i32 = arith.constant 0 : i32
    %0 = arith.cmpi eq, %arg1, %c0_i32 : i32
    %1 = arith.extui %0 : i1 to i32
    %c0_i32_0 = arith.constant 0 : i32
    %2 = arith.cmpi ne, %1, %c0_i32_0 : i32
    scf.if %2 {
      %cst = arith.constant 0.000000e+00 : f32
      %19 = vector.broadcast %cst : f32 to vector<8x128xf32>
      %c0_11 = arith.constant 0 : index
      %c0_12 = arith.constant 0 : index
      %20 = vector.load %arg8[%c0_11, %c0_12] : memref<8x128xf32, #tpu.memory_space<vmem>>, vector<8x128xf32>
      tpu.vector_store %arg8[%c0_11, %c0_12], %19 {strides = array<i32>} : memref<8x128xf32, #tpu.memory_space<vmem>>, vector<8x128xf32>,
    } else {
    }
    %c0 = arith.constant 0 : index
    %c0_1 = arith.constant 0 : index
    %3 = vector.load %arg2[%c0, %c0_1] : memref<8x128xf32, #tpu.memory_space<vmem>>, vector<8x128xf32>
    %c0_2 = arith.constant 0 : index
    %c0_3 = arith.constant 0 : index
    %4 = vector.load %arg3[%c0_2, %c0_3] : memref<8x128xf32, #tpu.memory_space<vmem>>, vector<8x128xf32>
    %c0_4 = arith.constant 0 : index
    %c0_5 = arith.constant 0 : index
    %5 = vector.load %arg4[%c0_4, %c0_5] : memref<8x128xf32, #tpu.memory_space<vmem>>, vector<8x128xf32>
    %c1_i32 = arith.constant 1 : i32
    %6 = arith.muli %arg0, %c1_i32 : i32
    %7 = arith.addi %6, %arg1 : i32
    %c1_i32_6 = arith.constant 1 : i32
    %8 = arith.addi %7, %c1_i32_6 : i32
    %c1024_i32 = arith.constant 1024 : i32
    %9 = arith.muli %8, %c1024_i32 : i32
    %c128_i32 = arith.constant 128 : i32
    %10 = arith.cmpi sle, %9, %c128_i32 : i32
    %11 = arith.extui %10 : i1 to i32
    %c0_i32_7 = arith.constant 0 : i32
    %12 = arith.cmpi ne, %11, %c0_i32_7 : i32
    scf.if %12 {
      %c0_11 = arith.constant 0 : index
      %c0_12 = arith.constant 0 : index
      %19 = vector.load %arg8[%c0_11, %c0_12] : memref<8x128xf32, #tpu.memory_space<vmem>>, vector<8x128xf32>
      %cst = arith.constant 1.000000e+00 : f32
      %20 = vector.broadcast %cst : f32 to vector<8x128xf32>
      %21 = arith.divf %20, %4 : vector<8x128xf32>
      %22 = arith.subf %5, %3 : vector<8x128xf32>
      %23 = arith.mulf %22, %21 : vector<8x128xf32>
      %cst_13 = arith.constant -5.000000e-01 : f32
      %24 = vector.broadcast %cst_13 : f32 to vector<8x128xf32>
      %25 = arith.mulf %24, %23 : vector<8x128xf32>
      %26 = arith.mulf %25, %23 : vector<8x128xf32>
      %27 = math.log %21 : vector<8x128xf32>
      %28 = arith.addf %26, %27 : vector<8x128xf32>
      %cst_14 = arith.constant 0.918938517 : f32
      %29 = vector.broadcast %cst_14 : f32 to vector<8x128xf32>
      %30 = arith.subf %28, %29 : vector<8x128xf32>
      %31 = vector.shape_cast %30 : vector<8x128xf32> to vector<1x8x1x128xf32>
      %cst_15 = arith.constant dense<0.000000e+00> : vector<8x128xf32>
      %32 = vector.multi_reduction <add>, %31, %cst_15 [0, 2] : vector<1x8x1x128xf32> to vector<8x128xf32>
      %33 = arith.addf %19, %32 : vector<8x128xf32>
      %c0_16 = arith.constant 0 : index
      %c0_17 = arith.constant 0 : index
      %34 = vector.load %arg8[%c0_16, %c0_17] : memref<8x128xf32, #tpu.memory_space<vmem>>, vector<8x128xf32>
      tpu.vector_store %arg8[%c0_16, %c0_17], %33 {strides = array<i32>} : memref<8x128xf32, #tpu.memory_space<vmem>>, vector<8x128xf32>,
    } else {
    }
    %true = arith.constant true
    %13 = arith.xori %10, %true : i1
    %14 = arith.extui %13 : i1 to i32
    %c0_i32_8 = arith.constant 0 : i32
    %15 = arith.cmpi ne, %14, %c0_i32_8 : i32
    scf.if %15 {
      %c8_i32 = arith.constant 8 : i32
      %19 = arith.muli %7, %c8_i32 : i32
      %20 = tpu.iota {dimensions = array<i32: 0>} : vector<8x128xi32>
      %21 = vector.broadcast %19 : i32 to vector<8x128xi32>
      %22 = arith.addi %21, %20 : vector<8x128xi32>
      %23 = tpu.iota {dimensions = array<i32: 1>} : vector<8x128xi32>
      %c128_i32_11 = arith.constant 128 : i32
      %24 = vector.broadcast %c128_i32_11 : i32 to vector<8x128xi32>
      %25 = arith.muli %22, %24 : vector<8x128xi32>
      %26 = arith.addi %25, %23 : vector<8x128xi32>
      %c128_i32_12 = arith.constant 128 : i32
      %27 = vector.broadcast %c128_i32_12 : i32 to vector<8x128xi32>
      %28 = arith.cmpi slt, %26, %27 : vector<8x128xi32>
      %cst = arith.constant 1.000000e+00 : f32
      %29 = vector.broadcast %cst : f32 to vector<8x128xf32>
      %30 = arith.select %28, %4, %29 : vector<8x128xi1>, vector<8x128xf32>
      %cst_13 = arith.constant 1.000000e+00 : f32
      %31 = vector.broadcast %cst_13 : f32 to vector<8x128xf32>
      %32 = arith.divf %31, %30 : vector<8x128xf32>
      %33 = arith.subf %5, %3 : vector<8x128xf32>
      %34 = arith.mulf %33, %32 : vector<8x128xf32>
      %cst_14 = arith.constant -5.000000e-01 : f32
      %35 = vector.broadcast %cst_14 : f32 to vector<8x128xf32>
      %36 = arith.mulf %35, %34 : vector<8x128xf32>
      %37 = arith.mulf %36, %34 : vector<8x128xf32>
      %38 = math.log %32 : vector<8x128xf32>
      %39 = arith.addf %37, %38 : vector<8x128xf32>
      %cst_15 = arith.constant 0.918938517 : f32
      %40 = vector.broadcast %cst_15 : f32 to vector<8x128xf32>
      %41 = arith.subf %39, %40 : vector<8x128xf32>
      %c0_16 = arith.constant 0 : index
      %c0_17 = arith.constant 0 : index
      %42 = vector.load %arg8[%c0_16, %c0_17] : memref<8x128xf32, #tpu.memory_space<vmem>>, vector<8x128xf32>
      %cst_18 = arith.constant 0.000000e+00 : f32
      %43 = vector.broadcast %cst_18 : f32 to vector<8x128xf32>
      %44 = arith.select %28, %41, %43 : vector<8x128xi1>, vector<8x128xf32>
      %45 = vector.shape_cast %44 : vector<8x128xf32> to vector<1x8x1x128xf32>
      %cst_19 = arith.constant dense<0.000000e+00> : vector<8x128xf32>
      %46 = vector.multi_reduction <add>, %45, %cst_19 [0, 2] : vector<1x8x1x128xf32> to vector<8x128xf32>
      %47 = arith.addf %42, %46 : vector<8x128xf32>
      %c0_20 = arith.constant 0 : index
      %c0_21 = arith.constant 0 : index
      %48 = vector.load %arg8[%c0_20, %c0_21] : memref<8x128xf32, #tpu.memory_space<vmem>>, vector<8x128xf32>
      tpu.vector_store %arg8[%c0_20, %c0_21], %47 {strides = array<i32>} : memref<8x128xf32, #tpu.memory_space<vmem>>, vector<8x128xf32>,
    } else {
    }
    %c0_i32_9 = arith.constant 0 : i32
    %16 = arith.cmpi eq, %arg1, %c0_i32_9 : i32
    %17 = arith.extui %16 : i1 to i32
    %c0_i32_10 = arith.constant 0 : i32
    %18 = arith.cmpi ne, %17, %c0_i32_10 : i32
    scf.if %18 {
      %c0_11 = arith.constant 0 : index
      %c0_12 = arith.constant 0 : index
      %19 = vector.load %arg8[%c0_11, %c0_12] : memref<8x128xf32, #tpu.memory_space<vmem>>, vector<8x128xf32>
      %20 = vector.shape_cast %19 : vector<8x128xf32> to vector<1x8x128xf32>
      %cst = arith.constant dense<0.000000e+00> : vector<1xf32>
      %21 = vector.multi_reduction <add>, %20, %cst [1, 2] : vector<1x8x128xf32> to vector<1xf32>
      %22 = vector.shape_cast %21 : vector<1xf32> to vector<1x1x1xf32>
      %23 = vector.extract %22[0, 0, 0] : f32 from vector<1x1x1xf32>
      %cst_13 = arith.constant 1.562500e-03 : f32
      %24 = arith.mulf %cst_13, %23 : f32
      %c0_14 = arith.constant 0 : index
      %c0_15 = arith.constant 0 : index
      %25 = vector.load %arg5[%c0_14, %c0_15] : memref<1x128xf32, #tpu.memory_space<vmem>>, vector<1x128xf32>
      %c0_16 = arith.constant 0 : index
      %c0_17 = arith.constant 0 : index
      %26 = vector.load %arg6[%c0_16, %c0_17] : memref<1x128xf32, #tpu.memory_space<vmem>>, vector<1x128xf32>
      %27 = arith.minimumf %25, %26 : vector<1x128xf32>
      %28 = vector.shape_cast %27 : vector<1x128xf32> to vector<1x1x128xf32>
      %cst_18 = arith.constant dense<0.000000e+00> : vector<1xf32>
      %29 = vector.multi_reduction <add>, %28, %cst_18 [1, 2] : vector<1x1x128xf32> to vector<1xf32>
      %30 = vector.shape_cast %29 : vector<1xf32> to vector<1x1x1xf32>
      %31 = vector.extract %30[0, 0, 0] : f32 from vector<1x1x1xf32>
      %cst_19 = arith.constant 1.250000e-01 : f32
      %32 = arith.mulf %31, %cst_19 : f32
      %c0_i32_20 = arith.constant 0 : i32
      %33 = arith.cmpi eq, %arg0, %c0_i32_20 : i32
      %cst_21 = arith.constant 0.000000e+00 : f32
      %34 = arith.select %33, %32, %cst_21 : f32
      %35 = arith.subf %24, %34 : f32
      %36 = vector.broadcast %35 : f32 to vector<1x8x128xf32>
      %c0_22 = arith.constant 0 : index
      %c0_23 = arith.constant 0 : index
      %c0_24 = arith.constant 0 : index
      %37 = vector.load %arg7[%c0_22, %c0_23, %c0_24] : memref<1x8x128xf32, #tpu.memory_space<vmem>>, vector<1x8x128xf32>
      tpu.vector_store %arg7[%c0_22, %c0_23, %c0_24], %36 {strides = array<i32>} : memref<1x8x128xf32, #tpu.memory_space<vmem>>, vector<1x8x128xf32>,
    } else {
    }
    return
  }
  func.func @transform_0(%arg0: i32, %arg1: i32) -> (i32, i32) {
    %c1_i32 = arith.constant 1 : i32
    %0 = arith.muli %arg0, %c1_i32 : i32
    %1 = arith.addi %0, %arg1 : i32
    %c0_i32 = arith.constant 0 : i32
    %2 = arith.minsi %1, %c0_i32 : i32
    %c0_i32_0 = arith.constant 0 : i32
    %c0_i32_1 = arith.constant 0 : i32
    return %2, %c0_i32_0 : i32, i32
  }
  func.func @transform_1(%arg0: i32, %arg1: i32) -> (i32, i32) {
    %c1_i32 = arith.constant 1 : i32
    %0 = arith.muli %arg0, %c1_i32 : i32
    %1 = arith.addi %0, %arg1 : i32
    %c0_i32 = arith.constant 0 : i32
    %2 = arith.minsi %1, %c0_i32 : i32
    %c0_i32_0 = arith.constant 0 : i32
    %c0_i32_1 = arith.constant 0 : i32
    return %2, %c0_i32_0 : i32, i32
  }
  func.func @transform_2(%arg0: i32, %arg1: i32) -> (i32, i32) {
    %c1_i32 = arith.constant 1 : i32
    %0 = arith.muli %arg0, %c1_i32 : i32
    %1 = arith.addi %0, %arg1 : i32
    %c0_i32 = arith.constant 0 : i32
    %2 = arith.minsi %1, %c0_i32 : i32
    %c0_i32_0 = arith.constant 0 : i32
    %c0_i32_1 = arith.constant 0 : i32
    return %2, %c0_i32_0 : i32, i32
  }
  func.func @transform_3(%arg0: i32, %arg1: i32) -> (i32, i32) {
    %c0_i32 = arith.constant 0 : i32
    %c0_i32_0 = arith.constant 0 : i32
    %c0_i32_1 = arith.constant 0 : i32
    return %c0_i32, %c0_i32_0 : i32, i32
  }
  func.func @transform_4(%arg0: i32, %arg1: i32) -> (i32, i32) {
    %c0_i32 = arith.constant 0 : i32
    %c0_i32_0 = arith.constant 0 : i32
    %c0_i32_1 = arith.constant 0 : i32
    return %c0_i32, %c0_i32_0 : i32, i32
  }
  func.func @transform_5(%arg0: i32, %arg1: i32) -> (i32, i32, i32) {
    %c0_i32 = arith.constant 0 : i32
    %c0_i32_0 = arith.constant 0 : i32
    %c0_i32_1 = arith.constant 0 : i32
    return %arg0, %c0_i32, %c0_i32_0 : i32, i32, i32
  }
}

</mosaic_0001>

<llo_original>
// kernel: tpu_custom_call.1
$region0: #{tpu_custom_call.1}
  #allocation0 [shape = 'u32[]', space=smem, size = 0x4, offset = 0x4, fixed_abs, tag = 'smem constant byte address 0x4 - core index']
  #allocation1 [shape = 'u32[144,128]{1,0:T(1,128)}', space=vmem, size = 0x12000, scoped, tag = 'internal scratch']
  #allocation2 [shape = 'f32[8,128]{1,0:T(8,128)}', space=vmem, size = 0x1000, scoped, tag = 'scratch operand']
  %s0 = inlined_call_operand.hbm [shape: f32[8,128], index: 0, kind: input, shape index: {}]
  %s1 = inlined_call_operand.hbm [shape: f32[8,128], index: 1, kind: input, shape index: {}]
  %s2 = inlined_call_operand.hbm [shape: f32[8,128], index: 2, kind: input, shape index: {}]
  %s3 = inlined_call_operand.vmem [shape: f32[1,128], index: 3, kind: input, shape index: {}]
  %s4 = inlined_call_operand.vmem [shape: f32[1,128], index: 4, kind: input, shape index: {}]
  %s5 = inlined_call_operand.hbm [shape: f32[1,8,128], index: 5, kind: output, shape index: {}]
  %s6 = sld [smem:[#allocation0]]
  $region58: #{tpu_custom_call.1} parent=0
    _
  %s8 = ssub.s32 1, %s6
  %s9 = scalar_select 0, %s8, %s6
  $region1: #{tpu_custom_call.1} parent=0
    #allocation3 [shape = 'u8[4096]{0}', space=vmem, size = 0x1000, scoped, tag = 'input window, operand 0, single buffered']
    #allocation4 [shape = 's32[1]{0}', space=sflag, size = 0x4, scoped, tag = 'scoped memory for tpu_custom_call.1']
    #allocation5 [shape = 's32[1]{0}', space=sflag, size = 0x4, scoped, tag = 'scoped memory for tpu_custom_call.1']
    #allocation6 [shape = 'u8[4096]{0}', space=vmem, size = 0x1000, scoped, tag = 'input window, operand 1, single buffered']
    #allocation7 [shape = 's32[1]{0}', space=sflag, size = 0x4, scoped, tag = 'scoped memory for tpu_custom_call.1']
    #allocation8 [shape = 'u8[4096]{0}', space=vmem, size = 0x1000, scoped, tag = 'input window, operand 2, single buffered']
    #allocation9 [shape = 'u8[4096]{0}', space=vmem, size = 0x1000, scoped, tag = 'output window, operand 0, single buffered']
    %10 = vsyncpa [#allocation4], 0
    %11 = vsyncpa [#allocation7], 0
    %12 = vsyncpa [#allocation5], 0
    // Predicated region
    $region2: #{tpu_custom_call.1} parent=1 // pred_check
      _
    $region3: #{tpu_custom_call.1} parent=1 // pred_check_branch
      %14 = sbr.rel (0) target = $region5
    $region4: #{tpu_custom_call.1} parent=1 // pred_region
      %s15 = sadd.s32 0, 0
      %p16 = scmp.lt.s32.totalorder %s15, 0
      %s17 = scalar_select %p16, %s15, 0
      %s19 = ssub.s32 128, 128
      %20 = vsyncadd [#allocation4], %s19
      %s21 = smul.addr %s17, 128
      %s22 = scalar_lea.hbm %s0, %s21
      %s24 = sshll.u32 [#allocation3], 4
      %s25 = int_to_ptr.vmem [resolvable:$true] %s24
      %27 = dma.hbm_to_vmem [thread:$0]  %s22, 128, %s25, [#allocation4]
    $region5: #{tpu_custom_call.1} parent=1 // pred_fallthru
      _
    // Predicated region
    $region6: #{tpu_custom_call.1} parent=1 // pred_check
      _
    $region7: #{tpu_custom_call.1} parent=1 // pred_check_branch
      %29 = sbr.rel (0) target = $region9
    $region8: #{tpu_custom_call.1} parent=1 // pred_region
      %s30 = sadd.s32 0, 0
      %p31 = scmp.lt.s32.totalorder %s30, 0
      %s32 = scalar_select %p31, %s30, 0
      %s34 = ssub.s32 128, 128
      %35 = vsyncadd [#allocation7], %s34
      %s36 = smul.addr %s32, 128
      %s37 = scalar_lea.hbm %s1, %s36
      %s39 = sshll.u32 [#allocation6], 4
      %s40 = int_to_ptr.vmem [resolvable:$true] %s39
      %42 = dma.hbm_to_vmem [thread:$0]  %s37, 128, %s40, [#allocation7]
    $region9: #{tpu_custom_call.1} parent=1 // pred_fallthru
      _
    // Predicated region
    $region10: #{tpu_custom_call.1} parent=1 // pred_check
      _
    $region11: #{tpu_custom_call.1} parent=1 // pred_check_branch
      %44 = sbr.rel (0) target = $region13
    $region12: #{tpu_custom_call.1} parent=1 // pred_region
      %s45 = sadd.s32 0, 0
      %p46 = scmp.lt.s32.totalorder %s45, 0
      %s47 = scalar_select %p46, %s45, 0
      %s49 = ssub.s32 128, 128
      %50 = vsyncadd [#allocation7], %s49
      %s51 = smul.addr %s47, 128
      %s52 = scalar_lea.hbm %s2, %s51
      %s54 = sshll.u32 [#allocation8], 4
      %s55 = int_to_ptr.vmem [resolvable:$true] %s54
      %57 = dma.hbm_to_vmem [thread:$0]  %s52, 128, %s55, [#allocation7]
    $region13: #{tpu_custom_call.1} parent=1 // pred_fallthru
      _
    // Predicated region
    $region14: #{tpu_custom_call.1} parent=1 // pred_check
      _
    $region15: #{tpu_custom_call.1} parent=1 // pred_check_branch
      %59 = sbr.rel (0) target = $region17
    $region16: #{tpu_custom_call.1} parent=1 // pred_region
      _
    $region17: #{tpu_custom_call.1} parent=1 // pred_fallthru
      _
    // Predicated region
    $region18: #{tpu_custom_call.1} parent=1 // pred_check
      _
    $region19: #{tpu_custom_call.1} parent=1 // pred_check_branch
      %61 = sbr.rel (0) target = $region21
    $region20: #{tpu_custom_call.1} parent=1 // pred_region
      _
    $region21: #{tpu_custom_call.1} parent=1 // pred_fallthru
      _
    // Predicated region
    $region22: #{tpu_custom_call.1} parent=1 // pred_check
      _
    $region23: #{tpu_custom_call.1} parent=1 // pred_check_branch
      %63 = sbr.rel (0) target = $region25
    $region24: #{tpu_custom_call.1} parent=1 // pred_region
      %64 = dma.done [#allocation4], 128
    $region25: #{tpu_custom_call.1} parent=1 // pred_fallthru
      _
    // Predicated region
    $region26: #{tpu_custom_call.1} parent=1 // pred_check
      _
    $region27: #{tpu_custom_call.1} parent=1 // pred_check_branch
      %66 = sbr.rel (0) target = $region29
    $region28: #{tpu_custom_call.1} parent=1 // pred_region
      %67 = dma.done [#allocation7], 128
    $region29: #{tpu_custom_call.1} parent=1 // pred_fallthru
      _
    // Predicated region
    $region30: #{tpu_custom_call.1} parent=1 // pred_check
      _
    $region31: #{tpu_custom_call.1} parent=1 // pred_check_branch
      %69 = sbr.rel (0) target = $region33
    $region32: #{tpu_custom_call.1} parent=1 // pred_region
      %70 = dma.done [#allocation7], 128
    $region33: #{tpu_custom_call.1} parent=1 // pred_fallthru
      _
    %s71 = sadd.s32 0, 0
    %p72 = scmp.lt.s32.totalorder %s71, 0
    %s73 = scalar_select %p72, %s71, 0
    %s74 = sadd.s32 0, 0
    %p75 = scmp.lt.s32.totalorder %s74, 0
    %s76 = scalar_select %p75, %s74, 0
    %s77 = sadd.s32 0, 0
    %p78 = scmp.lt.s32.totalorder %s77, 0
    %s79 = scalar_select %p78, %s77, 0
    %p80 = scmp.eq.s32.totalorder 0, 0
    // Predicated region
    $region34: #{tpu_custom_call.1} parent=1 // pred_check
      %p81 = pneg %p80
    $region35: #{tpu_custom_call.1} parent=1 // pred_check_branch
      %83 = sbr.rel (%p81) target = $region37
    $region36: #{tpu_custom_call.1} parent=1 // pred_region
      %84 = vst [vmem:[#allocation2] sm:$0xff] 0.0
    $region37: #{tpu_custom_call.1} parent=1 // pred_fallthru
      _
    %v85 = vld [vmem:[#allocation3] sm:$0xff]
    %v86 = vld [vmem:[#allocation6] sm:$0xff]
    %v87 = vld [vmem:[#allocation8] sm:$0xff]
    %s88 = sadd.s32 0, 0
    %s89 = sadd.s32 %s88, 1
    %s90 = smul.u32 %s89, 1024
    %p91 = scmp.le.s32.totalorder %s90, 128
    // Predicated region
    $region38: #{tpu_custom_call.1} parent=1 // pred_check
      %p92 = pneg %p91
    $region39: #{tpu_custom_call.1} parent=1 // pred_check_branch
      %94 = sbr.rel (%p92) target = $region41
    $region40: #{tpu_custom_call.1} parent=1 // pred_region
      %v95 = vld [vmem:[#allocation2] sm:$0xff]
      %v96 = vrcp.pop %v86
      %v97 = vmul.f32 1.0, %v96
      %v98 = vsub.f32 %v87, %v85
      %v99 = vmul.f32 %v98, %v97
      %v100 = vmul.f32 %v99, -0.5
      %v101 = vmul.f32 %v100, %v99
      %v102 = vlog2.pop %v97
      %v103 = vmul.f32 %v102, 0.6931472
      %v104 = vadd.f32 %v101, %v103
      %v105 = vsub.f32 %v104, 0.9189385
      %v106 = vadd.f32 %v105, 0.0
      %v107 = vadd.f32 %v95, %v106
      %108 = vst [vmem:[#allocation2] sm:$0xff] %v107
    $region41: #{tpu_custom_call.1} parent=1 // pred_fallthru
      _
    %p109 = scmp.gt.s32.totalorder %s90, 128
    // Predicated region
    $region42: #{tpu_custom_call.1} parent=1 // pred_check
      %p110 = pneg %p109
    $region43: #{tpu_custom_call.1} parent=1 // pred_check_branch
      %112 = sbr.rel (%p110) target = $region45
    $region44: #{tpu_custom_call.1} parent=1 // pred_region
      %s113 = smul.u32 %s88, 8
      %v114 = vlaneseq
      %v115 = vshrl.u32 %v114, 7
      %v116 = vstv %s113
      %v117 = vadd.s32 %v116, %v115
      %v118 = vlaneseq
      %v119 = vand.u32 %v118, 127
      %v120 = vmul.u32 %v117, 128
      %v121 = vadd.s32 %v120, %v119
      %vm122 = vcmp.lt.s32.totalorder %v121, 128
      %v123 = vsel %vm122, %v86, 1.0
      %v124 = vrcp.pop %v123
      %v125 = vmul.f32 1.0, %v124
      %v126 = vsub.f32 %v87, %v85
      %v127 = vmul.f32 %v126, %v125
      %v128 = vmul.f32 %v127, -0.5
      %v129 = vmul.f32 %v128, %v127
      %v130 = vlog2.pop %v125
      %v131 = vmul.f32 %v130, 0.6931472
      %v132 = vadd.f32 %v129, %v131
      %v133 = vsub.f32 %v132, 0.9189385
      %v134 = vld [vmem:[#allocation2] sm:$0xff]
      %v135 = vsel %vm122, %v133, 0.0
      %v136 = vadd.f32 %v135, 0.0
      %v137 = vadd.f32 %v134, %v136
      %138 = vst [vmem:[#allocation2] sm:$0xff] %v137
    $region45: #{tpu_custom_call.1} parent=1 // pred_fallthru
      _
    // Predicated region
    $region46: #{tpu_custom_call.1} parent=1 // pred_check
      %p139 = pneg %p80
    $region47: #{tpu_custom_call.1} parent=1 // pred_check_branch
      %141 = sbr.rel (%p139) target = $region49
    $region48: #{tpu_custom_call.1} parent=1 // pred_region
      %v142 = vld [vmem:[#allocation2] sm:$0xff]
      %143 = vadd.xlane.f32.xlu0 %v142
      %v144 = vpop.xlane.xlu0 %143
      %v145 = vrot.slane %v144, 4
      %v146 = vadd.f32 %v144, %v145
      %v147 = vrot.slane %v146, 2
      %v148 = vadd.f32 %v146, %v147
      %v149 = vrot.slane %v148, 1
      %v150 = vadd.f32 %v148, %v149
      %s151 = vtos %v150
      %s152 = smul.f32 %s151, 0.0015625
      %v153 = vld [vmem:[%s3] sm:$0x1]
      %v154 = vld [vmem:[%s4] sm:$0x1]
      %v155 = vmin.f32 %v153, %v154
      %vm156 = vcmask 1040384
      %v157 = vsel %vm156, %v155, 0.0
      %158 = vadd.xlane.f32.xlu0 %v157
      %v159 = vpop.xlane.xlu0 %158
      %v160 = vrot.slane %v159, 4
      %v161 = vadd.f32 %v159, %v160
      %v162 = vrot.slane %v161, 2
      %v163 = vadd.f32 %v161, %v162
      %v164 = vrot.slane %v163, 1
      %v165 = vadd.f32 %v163, %v164
      %s166 = vtos %v165
      %s167 = smul.f32 %s166, 0.125
      %p168 = scmp.eq.s32.totalorder 0, 0
      %s169 = scalar_select %p168, %s167, 0.0
      %s170 = ssub.f32 %s152, %s169
      %v171 = vstv %s170
      %172 = vst [vmem:[#allocation9] sm:$0xff] %v171
    $region49: #{tpu_custom_call.1} parent=1 // pred_fallthru
      _
    // Predicated region
    $region50: #{tpu_custom_call.1} parent=1 // pred_check
      _
    $region51: #{tpu_custom_call.1} parent=1 // pred_check_branch
      %174 = sbr.rel (0) target = $region53
    $region52: #{tpu_custom_call.1} parent=1 // pred_region
      %s176 = ssub.s32 128, 128
      %177 = vsyncadd [#allocation5], %s176
      %s179 = sshll.u32 [#allocation9], 4
      %s180 = int_to_ptr.vmem [resolvable:$true] %s179
      %182 = dma.vmem_to_hbm [thread:$0]  %s180, 128, %s5, [#allocation5]
    $region53: #{tpu_custom_call.1} parent=1 // pred_fallthru
      _
    // Predicated region
    $region54: #{tpu_custom_call.1} parent=1 // pred_check
      _
    $region55: #{tpu_custom_call.1} parent=1 // pred_check_branch
      %184 = sbr.rel (0) target = $region57
    $region56: #{tpu_custom_call.1} parent=1 // pred_region
      %185 = dma.done [#allocation5], 128
    $region57: #{tpu_custom_call.1} parent=1 // pred_fallthru
      _
    %186 = vsyncpa [#allocation4], 1
    %187 = vsyncpa [#allocation7], 1
    %188 = vsyncpa [#allocation5], 1

</llo_original>
